<compile_context>
chip_gen: v7x
topology: tpu7x:2x2x1
jax: 0.10.0
libtpu: 0.0.40
codegen_flags: <defaults>
</compile_context>

<pallas_src>
import functools

import jax
import jax.numpy as jnp
from jax import lax
from jax.experimental import pallas as pl
from jax.experimental.pallas import tpu as pltpu


def _cdiv(a, b):
    return -(-a // b)


def _round_up(x, m):
    return _cdiv(x, m) * m


def _elu(v):
    # torch.nn.ELU(alpha=1.0)
    return jnp.where(v > 0, v, jnp.exp(jnp.minimum(v, 0.0)) - 1.0)


# ---------------------------------------------------------------------------
# Kernels
# ---------------------------------------------------------------------------
def _gemm_bias_elu_kernel(p_ref, w_ref, b_ref, o_ref):
    """Single-K fast path: ELU(p @ w + b) computed and stored once per tile."""
    y = jnp.dot(p_ref[...], w_ref[...], preferred_element_type=jnp.float32)
    o_ref[...] = _elu(y + b_ref[...]).astype(o_ref.dtype)


def _gemm_bias_elu_ktiled_kernel(p_ref, w_ref, b_ref, o_ref, acc_ref, *, tk):
    """K-tiled path (only when 9*C_in is large): f32 VMEM accumulator; the
    weight matrix is fully VMEM-resident and the K chunk is sliced in-kernel."""
    k = pl.program_id(1)

    @pl.when(k == 0)
    def _():
        acc_ref[...] = jnp.zeros_like(acc_ref)

    k0 = pl.multiple_of(k * tk, tk)
    acc_ref[...] += jnp.dot(p_ref[...], w_ref[pl.ds(k0, tk), :],
                            preferred_element_type=jnp.float32)

    @pl.when(k == pl.num_programs(1) - 1)
    def _():
        o_ref[...] = _elu(acc_ref[...] + b_ref[...]).astype(o_ref.dtype)


# ---------------------------------------------------------------------------
# Generation-aware tiling config
# ---------------------------------------------------------------------------
def _tpu_generation_config():
    vmem_cap = None
    try:
        info = pltpu.get_tpu_info()
        vmem_cap = getattr(info, "vmem_capacity_bytes", None)
    except Exception:
        vmem_cap = None

    if vmem_cap is None:
        # Unknown chip: conservative values that are safe on every generation
        # (including v7x's 64 MiB VMEM); still request >= 2 M tiles so a
        # megacore part can shard the parallel M axis.
        return dict(vmem_limit=32 * 2**20, tm_target=512,
                    max_single_k=1024, tk=512, min_m_tiles=2)
    if vmem_cap <= 64 * 2**20:
        # v7x-class: 64 MiB VMEM per TC, 2 TensorCores -> split M at least 2-way.
        return dict(vmem_limit=48 * 2**20, tm_target=512,
                    max_single_k=2048, tk=1024, min_m_tiles=2)
    # v5e / v6e: 128 MiB VMEM, single TensorCore -> bigger tiles, fewer steps.
    return dict(vmem_limit=96 * 2**20, tm_target=1024,
                max_single_k=4096, tk=2048, min_m_tiles=1)


# ---------------------------------------------------------------------------
# Forward pass
# ---------------------------------------------------------------------------
def downsampling_block_forward(x, weight, bias):
    """x: (B, C_in, H, W) f32 NCHW.  weight: (C_out, C_in, 3, 3) torch layout.
    bias: (C_out,).  Returns ELU(conv2d(x, W, b, stride=2, padding=1)) NCHW."""
    B, C_in, H, W = x.shape
    C_out = weight.shape[0]
    H_out = (H + 2 - 3) // 2 + 1
    W_out = (W + 2 - 3) // 2 + 1

    # ---- im2col: layout plumbing, stays in XLA ---------------------------
    x_pad = jnp.pad(x, ((0, 0), (0, 0), (1, 1), (1, 1)))
    x_nhwc = jnp.transpose(x_pad, (0, 2, 3, 1))            # (B, H+2, W+2, C_in)
    taps = []
    for ky in range(3):
        for kx in range(3):
            taps.append(
                x_nhwc[:, ky: ky + 2 * H_out - 1: 2,
                          kx: kx + 2 * W_out - 1: 2, :])   # (B, H_out, W_out, C_in)
    M = B * H_out * W_out
    K = 9 * C_in
    patches = jnp.concatenate(taps, axis=-1).reshape(M, K)

    # weight[co, ci, ky, kx] -> w_mat[(ky*3+kx)*C_in + ci, co]
    w_mat = jnp.transpose(weight, (2, 3, 1, 0)).reshape(K, C_out)

    # ---- lane-dense N: pad C_out to a multiple of 128 ---------------------
    C_out_pad = _round_up(C_out, 128)
    if C_out_pad != C_out:
        w_mat = jnp.pad(w_mat, ((0, 0), (0, C_out_pad - C_out)))
        bias = jnp.pad(bias, (0, C_out_pad - C_out))
    b_row = bias.reshape(1, C_out_pad).astype(jnp.float32)

    # bf16 GEMM inputs, f32 accumulation + f32 epilogue.
    patches = patches.astype(jnp.bfloat16)
    w_mat = w_mat.astype(jnp.bfloat16)

    cfg = _tpu_generation_config()

    # ---- M tiling: bounded padding; >=2 tiles where megacore can use them --
    n_tiles = max(cfg["min_m_tiles"], _cdiv(M, cfg["tm_target"]))
    n_tiles = min(n_tiles, _cdiv(M, 8))              # never fewer than 8 rows/tile
    TM = _round_up(_cdiv(M, n_tiles), 8)

    # ---- K tiling ----------------------------------------------------------
    multi_k = K > cfg["max_single_k"]
    if multi_k:
        TK = cfg["tk"]
        K_pad = _round_up(K, TK)
    else:
        TK = K_pad = K

    # ---- shrink TM until the (double-buffered) working set fits VMEM -------
    def _vmem_bytes(tm):
        patches_buf = 2 * tm * TK * 2                      # bf16, double-buffered
        w_buf = 2 * K_pad * C_out_pad * 2                  # resident weights
        acc = tm * C_out_pad * 4 if multi_k else 0
        out_buf = 2 * tm * C_out_pad * 4
        return patches_buf + w_buf + acc + out_buf + 2 * C_out_pad * 4

    while TM > 8 and _vmem_bytes(TM) > int(cfg["vmem_limit"] * 0.85):
        TM = _round_up(_cdiv(TM, 2), 8)

    M_pad = _round_up(M, TM)
    m_tiles = M_pad // TM

    if M_pad != M or K_pad != K:
        patches = jnp.pad(patches, ((0, M_pad - M), (0, K_pad - K)))
    if K_pad != K:
        w_mat = jnp.pad(w_mat, ((0, K_pad - K), (0, 0)))

    if multi_k:
        k_tiles = K_pad // TK
        out_mat = pl.pallas_call(
            functools.partial(_gemm_bias_elu_ktiled_kernel, tk=TK),
            out_shape=jax.ShapeDtypeStruct((M_pad, C_out_pad), x.dtype),
            grid_spec=pltpu.PrefetchScalarGridSpec(
                num_scalar_prefetch=0,
                grid=(m_tiles, k_tiles),
                in_specs=[
                    pl.BlockSpec((TM, TK), lambda i, k: (i, k)),        # patches
                    pl.BlockSpec((K_pad, C_out_pad), lambda i, k: (0, 0)),  # weights (resident)
                    pl.BlockSpec((1, C_out_pad), lambda i, k: (0, 0)),  # bias row
                ],
                out_specs=pl.BlockSpec((TM, C_out_pad), lambda i, k: (i, 0)),
                scratch_shapes=[pltpu.VMEM((TM, C_out_pad), jnp.float32)],
            ),
            compiler_params=pltpu.CompilerParams(
                dimension_semantics=("parallel", "arbitrary"),
                vmem_limit_bytes=cfg["vmem_limit"],
            ),
        )(patches, w_mat, b_row)
    else:
        out_mat = pl.pallas_call(
            _gemm_bias_elu_kernel,
            out_shape=jax.ShapeDtypeStruct((M_pad, C_out_pad), x.dtype),
            grid_spec=pltpu.PrefetchScalarGridSpec(
                num_scalar_prefetch=0,
                grid=(m_tiles,),
                in_specs=[
                    pl.BlockSpec((TM, K_pad), lambda i: (i, 0)),        # patches
                    pl.BlockSpec((K_pad, C_out_pad), lambda i: (0, 0)), # weights (resident)
                    pl.BlockSpec((1, C_out_pad), lambda i: (0, 0)),     # bias row
                ],
                out_specs=pl.BlockSpec((TM, C_out_pad), lambda i: (i, 0)),
            ),
            compiler_params=pltpu.CompilerParams(
                dimension_semantics=("parallel",),
                vmem_limit_bytes=cfg["vmem_limit"],
            ),
        )(patches, w_mat, b_row)

    out = out_mat[:M, :C_out].reshape(B, H_out, W_out, C_out)
    return jnp.transpose(out, (0, 3, 1, 2))                 # NCHW, like PyTorch


# ---------------------------------------------------------------------------
# Parameter init (deterministic synthetic, torch-like uniform scale)
# ---------------------------------------------------------------------------
def init_downsampling_block(key, in_channels, out_channels):
    k_w, k_b = jax.random.split(key)
    fan_in = in_channels * 9
    bound = 1.0 / jnp.sqrt(fan_in)
    weight = jax.random.uniform(k_w, (out_channels, in_channels, 3, 3),
                                jnp.float32, -bound, bound)
    bias = jax.random.uniform(k_b, (out_channels,), jnp.float32, -bound, bound)
    return weight, bias


# ---------------------------------------------------------------------------
if __name__ == "__main__":
    B, C_in, H, W = 2, 4, 16, 16
    C_out = 8

    key = jax.random.PRNGKey(0)
    kx, kp = jax.random.split(key)
    x = jax.random.normal(kx, (B, C_in, H, W), dtype=jnp.float32)
    weight, bias = init_downsampling_block(kp, C_in, C_out)

    out = downsampling_block_forward(x, weight, bias)
    out = jax.block_until_ready(out)

    # pure-JAX reference of the same math (Conv2d(3,2,1) + ELU), f32 throughout
    ref = lax.conv_general_dilated(
        x, weight, window_strides=(2, 2), padding=((1, 1), (1, 1)),
        dimension_numbers=("NCHW", "OIHW", "NCHW"))
    ref = ref + bias[None, :, None, None]
    ref = jnp.where(ref > 0, ref, jnp.exp(jnp.minimum(ref, 0.0)) - 1.0)

    assert out.shape == (B, C_out, H // 2, W // 2)
    # bf16 GEMM inputs (f32 accumulation) -> tolerance is input-quantization level
    assert jnp.allclose(out, ref, atol=5e-2, rtol=5e-2), \
        float(jnp.max(jnp.abs(out - ref)))
    print("KERNEL_OK")
</pallas_src>

<mosaic_0001>
module attributes {stable_mosaic.version = 11 : i64} {
  func.func @_gemm_bias_elu_kernel(%arg0: i32, %arg1: memref<64x36xbf16, #tpu.memory_space<vmem>>, %arg2: memref<36x128xbf16, #tpu.memory_space<vmem>>, %arg3: memref<1x128xf32, #tpu.memory_space<vmem>>, %arg4: memref<64x128xf32, #tpu.memory_space<vmem>>) attributes {dimension_semantics = [#tpu.dimension_semantics<parallel>], iteration_bounds = array<i64: 2>, scalar_prefetch = 0 : i64, scratch_operands = 0 : i64, tpu.core_type = #tpu.core_type<tc>, window_params = [{transform_indices = @transform_0, window_bounds = array<i64: 64, 36>}, {pipeline_mode = #tpu.pipeline_mode<synchronous>, transform_indices = @transform_1, window_bounds = array<i64: 36, 128>}, {pipeline_mode = #tpu.pipeline_mode<synchronous>, transform_indices = @transform_2, window_bounds = array<i64: 1, 128>}, {transform_indices = @transform_3, window_bounds = array<i64: 64, 128>}]} {
    %c0 = arith.constant 0 : index
    %c0_0 = arith.constant 0 : index
    %0 = vector.load %arg1[%c0, %c0_0] : memref<64x36xbf16, #tpu.memory_space<vmem>>, vector<64x36xbf16>
    %c0_1 = arith.constant 0 : index
    %c0_2 = arith.constant 0 : index
    %1 = vector.load %arg2[%c0_1, %c0_2] : memref<36x128xbf16, #tpu.memory_space<vmem>>, vector<36x128xbf16>
    %cst = arith.constant dense<0.000000e+00> : vector<64x128xf32>
    %2 = tpu.matmul %0, %1, %cst {dimension_numbers = #tpu.dot_dimension_numbers<[1], [0], [0], [1], [0, 0, 1, 1], [], []>} : vector<64x36xbf16>, vector<36x128xbf16>, vector<64x128xf32> -> vector<64x128xf32>
    %c0_3 = arith.constant 0 : index
    %c0_4 = arith.constant 0 : index
    %3 = vector.load %arg3[%c0_3, %c0_4] : memref<1x128xf32, #tpu.memory_space<vmem>>, vector<1x128xf32>
    %4 = vector.broadcast %3 : vector<1x128xf32> to vector<64x128xf32>
    %5 = arith.addf %2, %4 : vector<64x128xf32>
    %cst_5 = arith.constant 0.000000e+00 : f32
    %6 = vector.broadcast %cst_5 : f32 to vector<64x128xf32>
    %7 = arith.cmpf ogt, %5, %6 : vector<64x128xf32>
    %cst_6 = arith.constant 0.000000e+00 : f32
    %8 = vector.broadcast %cst_6 : f32 to vector<64x128xf32>
    %9 = arith.minimumf %5, %8 : vector<64x128xf32>
    %10 = math.exp %9 : vector<64x128xf32>
    %cst_7 = arith.constant 1.000000e+00 : f32
    %11 = vector.broadcast %cst_7 : f32 to vector<64x128xf32>
    %12 = arith.subf %10, %11 : vector<64x128xf32>
    %13 = arith.select %7, %5, %12 : vector<64x128xi1>, vector<64x128xf32>
    %c0_8 = arith.constant 0 : index
    %c0_9 = arith.constant 0 : index
    %14 = vector.load %arg4[%c0_8, %c0_9] : memref<64x128xf32, #tpu.memory_space<vmem>>, vector<64x128xf32>
    tpu.vector_store %arg4[%c0_8, %c0_9], %13 {strides = array<i32>} : memref<64x128xf32, #tpu.memory_space<vmem>>, vector<64x128xf32>,
    return
  }
  func.func @transform_0(%arg0: i32) -> (i32, i32) {
    %c0_i32 = arith.constant 0 : i32
    %c0_i32_0 = arith.constant 0 : i32
    return %arg0, %c0_i32 : i32, i32
  }
  func.func @transform_1(%arg0: i32) -> (i32, i32) {
    %c0_i32 = arith.constant 0 : i32
    %c0_i32_0 = arith.constant 0 : i32
    %c0_i32_1 = arith.constant 0 : i32
    return %c0_i32, %c0_i32_0 : i32, i32
  }
  func.func @transform_2(%arg0: i32) -> (i32, i32) {
    %c0_i32 = arith.constant 0 : i32
    %c0_i32_0 = arith.constant 0 : i32
    %c0_i32_1 = arith.constant 0 : i32
    return %c0_i32, %c0_i32_0 : i32, i32
  }
  func.func @transform_3(%arg0: i32) -> (i32, i32) {
    %c0_i32 = arith.constant 0 : i32
    %c0_i32_0 = arith.constant 0 : i32
    return %arg0, %c0_i32 : i32, i32
  }
}

</mosaic_0001>

<llo_original>
// kernel: tpu_custom_call.1
$region0: #{tpu_custom_call.1}
  #allocation0 [shape = 'u32[]', space=smem, size = 0x4, offset = 0x4, fixed_abs, tag = 'smem constant byte address 0x4 - core index']
  #allocation1 [shape = 'u32[144,128]{1,0:T(1,128)}', space=vmem, size = 0x12000, scoped, tag = 'internal scratch']
  %s0 = inlined_call_operand.vmem [shape: bf16[128,36], index: 0, kind: input, shape index: {}]
  %s1 = inlined_call_operand.vmem [shape: bf16[36,128], index: 1, kind: input, shape index: {}]
  %s2 = inlined_call_operand.vmem [shape: f32[1,128], index: 2, kind: input, shape index: {}]
  %s3 = inlined_call_operand.hbm [shape: f32[128,128], index: 3, kind: output, shape index: {}]
  %s4 = sld [smem:[#allocation0]]
  $region45: #{tpu_custom_call.1} parent=0
    _
  %s6 = ssub.s32 1, %s4
  %s7 = scalar_select 0, %s6, %s4
  $region1: #{tpu_custom_call.1} parent=0
    #allocation2 [shape = 'u8[65536]{0}', space=vmem, size = 0x10000, scoped, tag = 'output window, operand 0']
    #allocation3 [shape = 's32[2]{0}', space=sflag, size = 0x8, scoped, tag = 'scoped memory for tpu_custom_call.1']
    %8 = vsyncpa [#allocation3], 0
    %s9 = scalar_lea.sflag [#allocation3], 1
    %10 = vsyncpa %s9, 0
    loop: start=0, step=1, limit=4
    $region2: #{tpu_custom_call.1} parent=1 // loop_pre_header
      _
    $region3: #{tpu_custom_call.1} parent=1 // loop_header
      %s12 = sphi 0, %s16
      %p13 = scmp.ge.s32.totalorder %s12, 4
      %s22 = sphi 0, %s24
      %s25 = sphi 0, %s22
      %s26 = sphi 0, %s25
      %s42 = sphi 0, %s26
      %s46 = sphi 0, %s46
      %s48 = sphi 0, %s46
      %s49 = sphi 0, %s48
      %s63 = sphi 0, %s49
      %s67 = sphi 0, %s67
      %s69 = sphi 0, %s67
      %s70 = sphi 0, %s69
      %s84 = sphi 0, %s70
      %s90 = sphi 0, %s92
      %s93 = sphi 0, %s90
      %s94 = sphi 0, %s93
      %s110 = sphi 0, %s94
    $region4: #{tpu_custom_call.1} parent=1 // loop_header_branch
      %15 = sbr.rel (%p13) target = $region8
    $region5: #{tpu_custom_call.1} parent=1 // loop_body
      %s17 = ssub.s32 %s12, 1
      %s18 = ssub.s32 %s12, 2
      %s19 = sadd.s32 %s12, 1
      %s20 = ssub.s32 %s12, %s19
      %p21 = scmp.eq.s32.totalorder %s20, 0
      %s23 = sadd.s32 %s22, 1
      %s24 = scalar_select %p21, %s22, %s23
      %p27 = pneg %p21
      %p28 = scmp.eq.s32.totalorder %s12, 1
      %p29 = por %p27, %p28
      %p30 = scmp.ne.s32.totalorder %s22, %s25
      %p31 = scmp.eq.s32.totalorder %s12, 0
      %p32 = por %p30, %p31
      %p33 = scmp.ne.s32.totalorder %s22, %s25
      %p34 = scmp.eq.s32.totalorder %s17, 1
      %p35 = por %p33, %p34
      %p36 = scmp.ne.s32.totalorder %s25, %s26
      %p37 = scmp.eq.s32.totalorder %s17, 0
      %p38 = por %p36, %p37
      %p39 = scmp.ne.s32.totalorder %s25, %s26
      %p40 = scmp.eq.s32.totalorder %s18, 1
      %p41 = por %p39, %p40
      %p43 = scmp.ne.s32.totalorder %s26, %s42
      %p44 = scmp.eq.s32.totalorder %s18, 0
      %p45 = por %p43, %p44
      %s47 = sadd.s32 %s46, 1
      %p50 = scmp.eq.s32.totalorder %s12, 1
      %p51 = scmp.ne.s32.totalorder %s46, %s48
      %p52 = scmp.eq.s32.totalorder %s12, 0
      %p53 = por %p51, %p52
      %p54 = scmp.ne.s32.totalorder %s46, %s48
      %p55 = scmp.eq.s32.totalorder %s17, 1
      %p56 = por %p54, %p55
      %p57 = scmp.ne.s32.totalorder %s48, %s49
      %p58 = scmp.eq.s32.totalorder %s17, 0
      %p59 = por %p57, %p58
      %p60 = scmp.ne.s32.totalorder %s48, %s49
      %p61 = scmp.eq.s32.totalorder %s18, 1
      %p62 = por %p60, %p61
      %p64 = scmp.ne.s32.totalorder %s49, %s63
      %p65 = scmp.eq.s32.totalorder %s18, 0
      %p66 = por %p64, %p65
      %s68 = sadd.s32 %s67, 1
      %p71 = scmp.eq.s32.totalorder %s12, 1
      %p72 = scmp.ne.s32.totalorder %s67, %s69
      %p73 = scmp.eq.s32.totalorder %s12, 0
      %p74 = por %p72, %p73
      %p75 = scmp.ne.s32.totalorder %s67, %s69
      %p76 = scmp.eq.s32.totalorder %s17, 1
      %p77 = por %p75, %p76
      %p78 = scmp.ne.s32.totalorder %s69, %s70
      %p79 = scmp.eq.s32.totalorder %s17, 0
      %p80 = por %p78, %p79
      %p81 = scmp.ne.s32.totalorder %s69, %s70
      %p82 = scmp.eq.s32.totalorder %s18, 1
      %p83 = por %p81, %p82
      %p85 = scmp.ne.s32.totalorder %s70, %s84
      %p86 = scmp.eq.s32.totalorder %s18, 0
      %p87 = por %p85, %p86
      %s88 = ssub.s32 %s12, %s19
      %p89 = scmp.eq.s32.totalorder %s88, 0
      %s91 = sadd.s32 %s90, 1
      %s92 = scalar_select %p89, %s90, %s91
      %p95 = pneg %p89
      %p96 = scmp.eq.s32.totalorder %s12, 1
      %p97 = por %p95, %p96
      %p98 = scmp.ne.s32.totalorder %s90, %s93
      %p99 = scmp.eq.s32.totalorder %s12, 0
      %p100 = por %p98, %p99
      %p101 = scmp.ne.s32.totalorder %s90, %s93
      %p102 = scmp.eq.s32.totalorder %s17, 1
      %p103 = por %p101, %p102
      %p104 = scmp.ne.s32.totalorder %s93, %s94
      %p105 = scmp.eq.s32.totalorder %s17, 0
      %p106 = por %p104, %p105
      %p107 = scmp.ne.s32.totalorder %s93, %s94
      %p108 = scmp.eq.s32.totalorder %s18, 1
      %p109 = por %p107, %p108
      %p111 = scmp.ne.s32.totalorder %s94, %s110
      %p112 = scmp.eq.s32.totalorder %s18, 0
      %p113 = por %p111, %p112
      %p114 = scmp.le.s32.totalorder 1, %s12
      %p115 = scmp.lt.s32.totalorder %s12, 3
      %p116 = pnand %p114, %p115
      %p117 = pneg %p116
      // Predicated region
      $region9: #{tpu_custom_call.1} parent=5 // pred_check
        _
      $region10: #{tpu_custom_call.1} parent=5 // pred_check_branch
        %119 = sbr.rel (%p116) target = $region12
      $region11: #{tpu_custom_call.1} parent=5 // pred_region
        %s120 = ssub.s32 %s12, 1
        // Predicated region
        $region13: #{tpu_custom_call.1} parent=11 // pred_check
          %p121 = pneg %p59
        $region14: #{tpu_custom_call.1} parent=11 // pred_check_branch
          %123 = sbr.rel (%p121) target = $region16
        $region15: #{tpu_custom_call.1} parent=11 // pred_region
          _
        $region16: #{tpu_custom_call.1} parent=11 // pred_fallthru
          _
        // Predicated region
        $region17: #{tpu_custom_call.1} parent=11 // pred_check
          %p124 = pneg %p80
        $region18: #{tpu_custom_call.1} parent=11 // pred_check_branch
          %126 = sbr.rel (%p124) target = $region20
        $region19: #{tpu_custom_call.1} parent=11 // pred_region
          _
        $region20: #{tpu_custom_call.1} parent=11 // pred_fallthru
          _
      $region12: #{tpu_custom_call.1} parent=5 // pred_fallthru
        _
      %p127 = scmp.lt.s32.totalorder %s12, 2
      // Predicated region
      $region21: #{tpu_custom_call.1} parent=5 // pred_check
        %p128 = pneg %p127
      $region22: #{tpu_custom_call.1} parent=5 // pred_check_branch
        %130 = sbr.rel (%p128) target = $region24
      $region23: #{tpu_custom_call.1} parent=5 // pred_region
        // Predicated region
        $region25: #{tpu_custom_call.1} parent=23 // pred_check
          %p131 = pneg %p32
        $region26: #{tpu_custom_call.1} parent=23 // pred_check_branch
          %133 = sbr.rel (%p131) target = $region28
        $region27: #{tpu_custom_call.1} parent=23 // pred_region
          %s134 = smul.u32 8, %s12
          %p135 = scmp.lt.s32.totalorder %s134, 15
          %s136 = scalar_select %p135, %s134, 15
          %s137 = smul.addr %s136, 4
          %s138 = scalar_lea.vmem %s0, %s137
          %s139 = smul.u32 8, %s12
        $region28: #{tpu_custom_call.1} parent=23 // pred_fallthru
          _
      $region24: #{tpu_custom_call.1} parent=5 // pred_fallthru
        _
      %p140 = scmp.le.s32.totalorder 1, %s12
      %p141 = scmp.lt.s32.totalorder %s12, 3
      %p142 = pnand %p140, %p141
      %p143 = pneg %p142
      // Predicated region
      $region29: #{tpu_custom_call.1} parent=5 // pred_check
        _
      $region30: #{tpu_custom_call.1} parent=5 // pred_check_branch
        %145 = sbr.rel (%p142) target = $region32
      $region31: #{tpu_custom_call.1} parent=5 // pred_region
        %s146 = ssub.s32 %s12, 1
        %s147 = smul.u32 8, %s17
        %p148 = scmp.lt.s32.totalorder %s147, 15
        %s149 = scalar_select %p148, %s147, 15
        %s150 = smul.addr %s149, 4
        %s151 = scalar_lea.vmem %s0, %s150
        %p152 = pneg %p38
        %p153 = pneg %p35
        %p154 = pneg %p59
        %p155 = pneg %p56
        %p156 = pneg %p80
        %p157 = pneg %p77
        %p158 = pneg %p106
        %p159 = pneg %p103
        %s160 = sand.u32 %s93, 1
        %s161 = scalar_lea.sflag [#allocation3], %s160
        %s162 = sand.u32 %s93, 1
        %s163 = smul.addr %s162, 64
        %s164 = scalar_lea.vmem [#allocation2], %s163
        %s165 = smul.u32 8, %s17
        %p166 = scmp.lt.s32.totalorder %s165, 15
        %s167 = scalar_select %p166, %s165, 15
        %s168 = smul.addr %s167, 4
        %s169 = scalar_lea.vmem %s0, %s168
        %s170 = smul.u32 8, %s17
        %s171 = smul.u32 8, %s17
        %v173 = vld [vmem:[%s169] sm:$0xf]
        %v174 = vld [vmem:[%s169 + $0x4] sm:$0xf]
        %v175 = vld [vmem:[%s169 + $0x8] sm:$0xf]
        %v176 = vld [vmem:[%s169 + $0xc] sm:$0xf]
        %v177 = vld [vmem:[%s169 + $0x10] sm:$0xf]
        %v178 = vld [vmem:[%s169 + $0x14] sm:$0xf]
        %v179 = vld [vmem:[%s169 + $0x18] sm:$0xf]
        %v180 = vld [vmem:[%s169 + $0x1c] sm:$0xf]
        %v181 = vld [vmem:[%s1] sm:$0xf]
        %v182 = vld [vmem:[%s1 + $0x4] sm:$0xf]
        %v183 = vld [vmem:[%s1 + $0x8] sm:$0xf]
        %v184 = vld [vmem:[%s1 + $0xc] sm:$0xf]
        %v185 = vld [vmem:[%s1 + $0x10] sm:$0x3]
        %v186 = vld [vmem:[%s2] sm:$0x1]
        %v188 = vlaneseq
        %v189 = vshrl.u32 %v188, 7
        %v190 = vsub.s32 0, %v189
        %v191 = vrot.slane %v186, %v190
        %v201 = vunpack.c.l.b16 %v173
        %v202 = vunpack.c.l.b16 %v174
        %v203 = vunpack.c.l.b16 %v175
        %v204 = vunpack.c.l.b16 %v176
        %v205 = vunpack.c.l.b16 %v177
        %v206 = vunpack.c.l.b16 %v178
        %v207 = vunpack.c.l.b16 %v179
        %v208 = vunpack.c.l.b16 %v180
        %v209 = vpack.c.b16 %v202, %v201
        %v210 = vpack.c.b16 %v204, %v203
        %v211 = vpack.c.b16 %v206, %v205
        %v212 = vpack.c.b16 %v208, %v207
        %v218 = vunpack.c.l.b16 %v181
        %v219 = vunpack.c.l.b16 %v182
        %v220 = vunpack.c.l.b16 %v183
        %v221 = vunpack.c.l.b16 %v184
        %v222 = vunpack.c.l.b16 %v185
        %v223 = vpack.c.b16 %v219, %v218
        %v224 = vpack.c.b16 %v221, %v220
        %v225 = vpack.c.b16 %v222, %v222
        %vm228 = vcmask 293888
        %v230 = vsel %vm228, %v209, 0
        %v233 = vsel %vm228, %v210, 0
        %v236 = vsel %vm228, %v211, 0
        %v239 = vsel %vm228, %v212, 0
        %vm241 = vcmask 1041408
        %v243 = vsel %vm241, %v225, 0
        %245 = vmatprep.subr.bf16.mxu0 0
        %246 = vmatpush1.bf16.msra.mxu0 %v223
        %247 = vmatprep.subr.bf16.mxu0 0
        %248 = vmatpush1.bf16.msra.mxu0 %v224
        %249 = vmatprep.subr.bf16.mxu0 0
        %250 = vmatpush1.bf16.msra.mxu0 %v243
        %251 = vmatprep.subr.bf16.mxu0 0
        %252 = vmatpush1.bf16.msra.mxu0 0
        %253 = vmatprep.subr.bf16.mxu0 0
        %254 = vmatpush1.bf16.msra.mxu0 0
        %255 = vmatprep.subr.bf16.mxu0 0
        %256 = vmatpush1.bf16.msra.mxu0 0
        %257 = vmatprep.subr.bf16.mxu0 0
        %258 = vmatpush1.bf16.msra.mxu0 0
        %259 = vmatprep.subr.bf16.mxu0 0
        %260 = vmatpush1.bf16.msra.mxu0 0
        %261 = vmatprep.subr.bf16.mxu0 0
        %262 = vmatpush1.bf16.msra.mxu0 0
        %263 = vmatprep.subr.bf16.mxu0 0
        %264 = vmatpush1.bf16.msra.mxu0 0
        %265 = vmatprep.subr.bf16.mxu0 0
        %266 = vmatpush1.bf16.msra.mxu0 0
        %267 = vmatprep.subr.bf16.mxu0 0
        %268 = vmatpush1.bf16.msra.mxu0 0
        %269 = vmatprep.subr.bf16.mxu0 0
        %270 = vmatpush1.bf16.msra.mxu0 0
        %271 = vmatprep.subr.bf16.mxu0 0
        %272 = vmatpush1.bf16.msra.mxu0 0
        %273 = vmatprep.subr.bf16.mxu0 0
        %274 = vmatpush1.bf16.msra.mxu0 0
        %275 = vmatprep.subr.bf16.mxu0 0
        %276 = vmatpush1.bf16.msra.mxu0 0
        %277 = vmatprep.mubr.bf16.mxu0 0
        %278 = vmatmul.mubr.bf16.gmra.mrb[0].mxu0 %v230
        %v279 = vpop.f32.mrb[0].mxu0
        %v280 = vadd.f32 %v191, %v279
        %v281 = vpop.f32.mrb[0].mxu0
        %v282 = vpop.f32.mrb[0].mxu0
        %v283 = vadd.f32 %v191, %v282
        %v284 = vpop.f32.mrb[0].mxu0
        %285 = vmatprep.mubr.bf16.mxu0 0
        %286 = vmatmul.mubr.bf16.gmra.mrb[0].mxu0 %v233
        %v287 = vpop.f32.mrb[0].mxu0
        %v288 = vadd.f32 %v191, %v287
        %v289 = vpop.f32.mrb[0].mxu0
        %v290 = vpop.f32.mrb[0].mxu0
        %v291 = vadd.f32 %v191, %v290
        %v292 = vpop.f32.mrb[0].mxu0
        %293 = vmatprep.mubr.bf16.mxu0 0
        %294 = vmatmul.mubr.bf16.gmra.mrb[0].mxu0 %v236
        %v295 = vpop.f32.mrb[0].mxu0
        %v296 = vadd.f32 %v191, %v295
        %v297 = vpop.f32.mrb[0].mxu0
        %v298 = vpop.f32.mrb[0].mxu0
        %v299 = vadd.f32 %v191, %v298
        %v300 = vpop.f32.mrb[0].mxu0
        %301 = vmatprep.mubr.bf16.mxu0 0
        %302 = vmatmul.mubr.bf16.gmra.mrb[0].mxu0 %v239
        %v303 = vpop.f32.mrb[0].mxu0
        %v304 = vadd.f32 %v191, %v303
        %v305 = vpop.f32.mrb[0].mxu0
        %v306 = vpop.f32.mrb[0].mxu0
        %v307 = vadd.f32 %v191, %v306
        %v308 = vpop.f32.mrb[0].mxu0
        %309 = vdwg.mxu0
        %vm310 = vcmp.gt.f32.partialorder %v280, 0.0
        %vm311 = vcmp.gt.f32.partialorder %v283, 0.0
        %vm312 = vcmp.gt.f32.partialorder %v288, 0.0
        %vm313 = vcmp.gt.f32.partialorder %v291, 0.0
        %vm314 = vcmp.gt.f32.partialorder %v296, 0.0
        %vm315 = vcmp.gt.f32.partialorder %v299, 0.0
        %vm316 = vcmp.gt.f32.partialorder %v304, 0.0
        %vm317 = vcmp.gt.f32.partialorder %v307, 0.0
        %v318 = vmin.f32 %v280, 0.0
        %v319 = vmin.f32 %v283, 0.0
        %v320 = vmin.f32 %v288, 0.0
        %v321 = vmin.f32 %v291, 0.0
        %v322 = vmin.f32 %v296, 0.0
        %v323 = vmin.f32 %v299, 0.0
        %v324 = vmin.f32 %v304, 0.0
        %v325 = vmin.f32 %v307, 0.0
        %v326 = vmul.f32 %v318, 1.442695
        %v327 = vpow.pop %v326
        %v328 = vmul.f32 %v319, 1.442695
        %v329 = vpow.pop %v328
        %v330 = vmul.f32 %v320, 1.442695
        %v331 = vpow.pop %v330
        %v332 = vmul.f32 %v321, 1.442695
        %v333 = vpow.pop %v332
        %v334 = vmul.f32 %v322, 1.442695
        %v335 = vpow.pop %v334
        %v336 = vmul.f32 %v323, 1.442695
        %v337 = vpow.pop %v336
        %v338 = vmul.f32 %v324, 1.442695
        %v339 = vpow.pop %v338
        %v340 = vmul.f32 %v325, 1.442695
        %v341 = vpow.pop %v340
        %v342 = vsub.f32 %v327, 1.0
        %v343 = vsub.f32 %v329, 1.0
        %v344 = vsub.f32 %v331, 1.0
        %v345 = vsub.f32 %v333, 1.0
        %v346 = vsub.f32 %v335, 1.0
        %v347 = vsub.f32 %v337, 1.0
        %v348 = vsub.f32 %v339, 1.0
        %v349 = vsub.f32 %v341, 1.0
        %v350 = vsel %vm310, %v280, %v342
        %v351 = vsel %vm311, %v283, %v343
        %v352 = vsel %vm312, %v288, %v344
        %v353 = vsel %vm313, %v291, %v345
        %v354 = vsel %vm314, %v296, %v346
        %v355 = vsel %vm315, %v299, %v347
        %v356 = vsel %vm316, %v304, %v348
        %v357 = vsel %vm317, %v307, %v349
        %358 = vst [vmem:[%s164] sm:$0xff] %v350
        %359 = vst [vmem:[%s164 + $0x8] sm:$0xff] %v351
        %360 = vst [vmem:[%s164 + $0x10] sm:$0xff] %v352
        %361 = vst [vmem:[%s164 + $0x18] sm:$0xff] %v353
        %362 = vst [vmem:[%s164 + $0x20] sm:$0xff] %v354
        %363 = vst [vmem:[%s164 + $0x28] sm:$0xff] %v355
        %364 = vst [vmem:[%s164 + $0x30] sm:$0xff] %v356
        %365 = vst [vmem:[%s164 + $0x38] sm:$0xff] %v357
        %s366 = sand.u32 %s93, 1
        %s367 = scalar_lea.sflag [#allocation3], %s366
        %s368 = sand.u32 %s93, 1
        %s369 = smul.addr %s368, 64
        %s370 = scalar_lea.vmem [#allocation2], %s369
        // Predicated region
        $region33: #{tpu_custom_call.1} parent=31 // pred_check
          %p371 = pneg %p103
        $region34: #{tpu_custom_call.1} parent=31 // pred_check_branch
          %373 = sbr.rel (%p371) target = $region36
        $region35: #{tpu_custom_call.1} parent=31 // pred_region
          %s374 = smul.u32 8, %s17
          %s376 = ssub.s32 1024, 1024
          %377 = vsyncadd %s367, %s376
          %s378 = smul.addr %s374, 128
          %s379 = scalar_lea.hbm %s3, %s378
          %s380 = sshll.u32 %s370, 4
          %s381 = int_to_ptr.vmem [resolvable:$true] %s380
          %386 = dma.vmem_to_hbm [thread:$0]  %s381, 1024, %s379, %s367, 128, 128, 8
        $region36: #{tpu_custom_call.1} parent=31 // pred_fallthru
          _
      $region32: #{tpu_custom_call.1} parent=5 // pred_fallthru
        _
      %p387 = scmp.le.s32.totalorder 2, %s12
      // Predicated region
      $region37: #{tpu_custom_call.1} parent=5 // pred_check
        %p388 = pneg %p387
      $region38: #{tpu_custom_call.1} parent=5 // pred_check_branch
        %390 = sbr.rel (%p388) target = $region40
      $region39: #{tpu_custom_call.1} parent=5 // pred_region
        %s391 = ssub.s32 %s12, 2
        // Predicated region
        $region41: #{tpu_custom_call.1} parent=39 // pred_check
          %p392 = pneg %p109
        $region42: #{tpu_custom_call.1} parent=39 // pred_check_branch
          %394 = sbr.rel (%p392) target = $region44
        $region43: #{tpu_custom_call.1} parent=39 // pred_region
          %s395 = sand.u32 %s94, 1
          %s396 = scalar_lea.sflag [#allocation3], %s395
          %s397 = sand.u32 %s94, 1
          %s398 = smul.addr %s397, 64
          %s399 = scalar_lea.vmem [#allocation2], %s398
          %400 = dma.done %s396, 1024
        $region44: #{tpu_custom_call.1} parent=39 // pred_fallthru
          _
      $region40: #{tpu_custom_call.1} parent=5 // pred_fallthru
        _
    $region6: #{tpu_custom_call.1} parent=1 // loop_footer
      %s16 = sadd.s32 1, %s12
    $region7: #{tpu_custom_call.1} parent=1 // loop_footer_branch
      %11 = sbr.rel target = $region3
    $region8: #{tpu_custom_call.1} parent=1 // loop_exit
      _
    %401 = vsyncpa [#allocation3], 1
    %s402 = scalar_lea.sflag [#allocation3], 1
    %403 = vsyncpa %s402, 1

</llo_original>
